<compile_context>
chip_gen: v5e
topology: v5e:2x2
jax: 0.10.0
libtpu: 0.0.40
codegen_flags: <defaults>
</compile_context>

<pallas_src>
import numpy as np

import jax
import jax.numpy as jnp
from jax import lax
from jax.experimental import pallas as pl
from jax.experimental.pallas import tpu as pltpu


def _downsample_kernel(x_ref, w_ref, o_ref):
    # x_ref: (1, TH//2 + 1, W//2 + 1, 4*Cin)  quad-split padded row slab (bf16),
    #        lane index = (row_parity*2 + col_parity)*Cin + cin
    # w_ref: (9*Cin, Cout)                    tap-folded weights, row = (dy*3+dx)*Cin + cin
    # o_ref: (1, TH//2, W//2, 4*Cout)         pixel-unshuffled output tile,
    #        lane index = (r*2 + s)*Cout + cout
    Hh = o_ref.shape[1]                 # TH // 2
    Wh = o_ref.shape[2]                 # W  // 2
    Cin = x_ref.shape[3] // 4
    Cout = o_ref.shape[3] // 4

    w = w_ref[...]                      # (9*Cin, Cout), bf16

    # The 36 (sub-position, tap) references hit only 16 distinct quadrant slices;
    # load + reshape each one once and reuse.
    cache = {}

    def quad_slice(hh0, ww0, q):
        key = (hh0, ww0, q)
        if key not in cache:
            blk = x_ref[0, hh0:hh0 + Hh, ww0:ww0 + Wh,
                        q * Cin:(q + 1) * Cin]                  # (Hh, Wh, Cin)
            cache[key] = blk.reshape(Hh * Wh, Cin)
        return cache[key]

    outs = []
    for r in range(2):                  # PixelUnshuffle row offset
        for s in range(2):              # PixelUnshuffle col offset
            taps = []
            for dy in range(3):
                for dx in range(3):
                    # conv input row = 2*ho + r + dy = 2*(ho + hh0) + pr, same for cols.
                    pr, hh0 = (r + dy) & 1, (r + dy) >> 1
                    pc, ww0 = (s + dx) & 1, (s + dx) >> 1
                    taps.append(quad_slice(hh0, ww0, pr * 2 + pc))
            # K-folded im2col patch: (Hh*Wh, 9*Cin), bf16.
            patch = jnp.concatenate(taps, axis=-1)
            # Single MXU contraction per sub-position, f32 accumulation.
            acc = jnp.dot(patch, w, preferred_element_type=jnp.float32)   # (Hh*Wh, Cout)
            outs.append(acc.reshape(Hh, Wh, Cout))
    # Lane-dense fused PixelUnshuffle store: last dim = 4*Cout, order (r, s, c).
    out_tile = jnp.concatenate(outs, axis=-1)                              # (Hh, Wh, 4*Cout)
    o_ref[0] = out_tile.astype(o_ref.dtype)


def _vmem_limit_bytes():
    # 128 MiB on v5e/v6e -> 96 MiB limit; 64 MiB on v7x -> 48 MiB limit.
    try:
        cap = int(pltpu.get_tpu_info().vmem_capacity_bytes)
    except Exception:
        cap = 64 * 1024 * 1024          # conservative fallback (v7x-sized)
    return (cap * 3) // 4


def _pick_row_tile(H, W, C, Cout, in_bytes, out_bytes, budget_bytes):
    """Largest even divisor of H whose (double-buffered) tiles fit the VMEM budget."""
    best = 2
    for th in range(2, H + 1, 2):
        if H % th:
            continue
        in_tile = (th + 2) * (W + 2) * C * in_bytes          # quad-split slab, same bytes
        out_tile = (th // 2) * (W // 2) * 4 * Cout * out_bytes
        patch = (th // 2) * (W // 2) * 9 * C * in_bytes * 2  # ~2 live im2col patches
        acc = th * W * Cout * 4                              # 4 f32 sub-position accs
        weights = 9 * C * Cout * in_bytes
        need = 2 * (in_tile + out_tile) + patch + acc + weights
        if need <= budget_bytes:
            best = th
    # TODO(synk): very wide images may still exceed the budget at th=2; W-tiling not needed
    # for Restormer shapes so it is not implemented.
    return best


def downsample_forward(x_nchw, conv_weight, *, row_tile=None,
                       compute_dtype=jnp.bfloat16):
    """nn.Sequential(Conv2d(C, C//2, 3, padding=1, bias=False), nn.PixelUnshuffle(2)).

    x_nchw: (N, C, H, W); conv_weight: (C//2, C, 3, 3) in PyTorch OIHW layout.
    Returns (N, 2*C, H//2, W//2).
    """
    N, C, H, W = x_nchw.shape
    Cout = conv_weight.shape[0]
    assert conv_weight.shape == (C // 2, C, 3, 3), conv_weight.shape
    assert C % 2 == 0 and H % 2 == 0 and W % 2 == 0, "DownSample needs even C, H, W"
    out_dtype = x_nchw.dtype

    vmem_limit = _vmem_limit_bytes()
    in_b = np.dtype(compute_dtype).itemsize
    out_b = np.dtype(out_dtype).itemsize
    if row_tile is None:
        row_tile = _pick_row_tile(H, W, C, Cout, in_b, out_b, vmem_limit // 2)
    TH = int(row_tile)
    assert TH % 2 == 0 and H % TH == 0, (TH, H)
    nT = H // TH
    Hh, Wh = TH // 2, W // 2
    HH, WW = Hh + 1, Wh + 1              # quad-split padded slab dims

    # --- wrapper glue (fuses into one XLA pass under jit) ------------------------------
    # NCHW -> NHWC, cast to MXU compute dtype, conv padding=1.
    x_nhwc = jnp.transpose(x_nchw, (0, 2, 3, 1)).astype(compute_dtype)
    x_pad = jnp.pad(x_nhwc, ((0, 0), (1, 1), (1, 1), (0, 0)))      # (N, H+2, W+2, C)
    # Halo'd row slabs: slab t = padded rows [t*TH, t*TH + TH + 2).
    row_idx = (jnp.arange(nT) * TH)[:, None] + jnp.arange(TH + 2)[None, :]
    x_slabs = x_pad[:, row_idx]                                     # (N, nT, TH+2, W+2, C)
    # Split rows/cols by parity and fold the two parity bits into the lane (channel) dim:
    # x_quad[..., (pr*2+pc)*C + c] = slab[2*hh + pr, 2*ww + pc, c]
    xq = x_slabs.reshape(N, nT, HH, 2, WW, 2, C)
    xq = jnp.transpose(xq, (0, 1, 2, 4, 3, 5, 6))
    x_quad = xq.reshape(N * nT, HH, WW, 4 * C)

    # (Cout, Cin, 3, 3) -> (9*Cin, Cout), row = (dy*3 + dx)*Cin + cin.
    w_folded = jnp.transpose(conv_weight, (2, 3, 1, 0)).reshape(9 * C, Cout)
    w_folded = w_folded.astype(compute_dtype)
    # ------------------------------------------------------------------------------------

    cost = pl.CostEstimate(
        flops=2 * 9 * N * H * W * C * Cout,
        transcendentals=0,
        bytes_accessed=(N * nT * HH * WW * 4 * C * in_b
                        + 9 * C * Cout * in_b
                        + N * nT * Hh * Wh * 4 * Cout * out_b),
    )

    out_k = pl.pallas_call(
        _downsample_kernel,
        out_shape=jax.ShapeDtypeStruct((N * nT, Hh, Wh, 4 * Cout), out_dtype),
        grid_spec=pltpu.PrefetchScalarGridSpec(
            num_scalar_prefetch=0,
            grid=(N * nT,),
            in_specs=[
                pl.BlockSpec((1, HH, WW, 4 * C), lambda i: (i, 0, 0, 0)),
                pl.BlockSpec((9 * C, Cout), lambda i: (0, 0)),
            ],
            out_specs=pl.BlockSpec((1, Hh, Wh, 4 * Cout), lambda i: (i, 0, 0, 0)),
        ),
        compiler_params=pltpu.CompilerParams(
            dimension_semantics=("parallel",),
            vmem_limit_bytes=int(vmem_limit)),
        cost_estimate=cost,
    )(x_quad, w_folded)

    # Reassemble NCHW; the PixelUnshuffle channel permutation (c*4 + r*2 + s) folds into
    # the one unavoidable channels-last -> NCHW output transpose.
    y = out_k.reshape(N, H // 2, W // 2, 2, 2, Cout)   # (n, ho, wo, r, s, c)
    y = jnp.transpose(y, (0, 5, 3, 4, 1, 2))           # (n, c, r, s, ho, wo)
    return y.reshape(N, 4 * Cout, H // 2, W // 2)


def _reference(x_nchw, conv_weight, compute_dtype):
    # Pure-JAX reference on compute_dtype-rounded operands (kernel uses bf16 MXU operands
    # with f32 accumulation, so only accumulation order differs).
    xr = x_nchw.astype(compute_dtype).astype(jnp.float32)
    wr = conv_weight.astype(compute_dtype).astype(jnp.float32)
    conv = lax.conv_general_dilated(
        xr, wr, window_strides=(1, 1), padding=((1, 1), (1, 1)),
        dimension_numbers=("NCHW", "OIHW", "NCHW"),
        precision=lax.Precision.HIGHEST)
    Nc, Cc, Hc, Wc = conv.shape
    y = conv.reshape(Nc, Cc, Hc // 2, 2, Wc // 2, 2)
    y = jnp.transpose(y, (0, 1, 3, 5, 2, 4))
    return y.reshape(Nc, Cc * 4, Hc // 2, Wc // 2)


if __name__ == "__main__":
    key = jax.random.PRNGKey(0)
    k_x, k_w = jax.random.split(key)

    N, C, H, W = 2, 4, 16, 16
    x = jax.random.normal(k_x, (N, C, H, W), dtype=jnp.float32)
    fan_in = C * 3 * 3
    w = jax.random.normal(k_w, (C // 2, C, 3, 3), dtype=jnp.float32) / jnp.sqrt(fan_in)

    fwd = jax.jit(downsample_forward, static_argnames=("row_tile", "compute_dtype"))
    ref = _reference(x, w, jnp.bfloat16)

    # Explicit row tile of 8 -> 2 halo'd slabs per image (exercises the tiled path).
    out = jax.block_until_ready(fwd(x, w, row_tile=8))
    assert out.shape == (N, 2 * C, H // 2, W // 2), out.shape
    err = float(jnp.max(jnp.abs(out - ref)))
    assert err < 1e-3, err

    # Auto tile-size path (whole image per grid step at this toy size).
    out2 = jax.block_until_ready(fwd(x, w))
    err2 = float(jnp.max(jnp.abs(out2 - ref)))
    assert err2 < 1e-3, err2

    print("KERNEL_OK")
</pallas_src>

<mosaic_0001>
module attributes {stable_mosaic.version = 11 : i64} {
  func.func @_downsample_kernel(%arg0: i32, %arg1: memref<1x5x9x16xbf16, #tpu.memory_space<vmem>>, %arg2: memref<36x2xbf16, #tpu.memory_space<vmem>>, %arg3: memref<1x4x8x8xf32, #tpu.memory_space<vmem>>) attributes {dimension_semantics = [#tpu.dimension_semantics<parallel>], iteration_bounds = array<i64: 4>, scalar_prefetch = 0 : i64, scratch_operands = 0 : i64, tpu.core_type = #tpu.core_type<tc>, window_params = [{transform_indices = @transform_0, window_bounds = array<i64: 1, 5, 9, 16>}, {pipeline_mode = #tpu.pipeline_mode<synchronous>, transform_indices = @transform_1, window_bounds = array<i64: 36, 2>}, {transform_indices = @transform_2, window_bounds = array<i64: 1, 4, 8, 8>}]} {
    %c0 = arith.constant 0 : index
    %c0_0 = arith.constant 0 : index
    %0 = vector.load %arg2[%c0, %c0_0] : memref<36x2xbf16, #tpu.memory_space<vmem>>, vector<36x2xbf16>
    %c0_1 = arith.constant 0 : index
    %c0_2 = arith.constant 0 : index
    %c0_3 = arith.constant 0 : index
    %c0_4 = arith.constant 0 : index
    %1 = vector.load %arg1[%c0_1, %c0_2, %c0_3, %c0_4] : memref<1x5x9x16xbf16, #tpu.memory_space<vmem>>, vector<1x4x8x4xbf16>
    %2 = vector.shape_cast %1 : vector<1x4x8x4xbf16> to vector<4x8x4xbf16>
    %3 = vector.shape_cast %2 : vector<4x8x4xbf16> to vector<32x4xbf16>
    %c0_5 = arith.constant 0 : index
    %c0_6 = arith.constant 0 : index
    %c0_7 = arith.constant 0 : index
    %c4 = arith.constant 4 : index
    %4 = vector.load %arg1[%c0_5, %c0_6, %c0_7, %c4] : memref<1x5x9x16xbf16, #tpu.memory_space<vmem>>, vector<1x4x8x4xbf16>
    %5 = vector.shape_cast %4 : vector<1x4x8x4xbf16> to vector<4x8x4xbf16>
    %6 = vector.shape_cast %5 : vector<4x8x4xbf16> to vector<32x4xbf16>
    %c0_8 = arith.constant 0 : index
    %c0_9 = arith.constant 0 : index
    %c1 = arith.constant 1 : index
    %c0_10 = arith.constant 0 : index
    %7 = vector.load %arg1[%c0_8, %c0_9, %c1, %c0_10] : memref<1x5x9x16xbf16, #tpu.memory_space<vmem>>, vector<1x4x8x4xbf16>
    %8 = vector.shape_cast %7 : vector<1x4x8x4xbf16> to vector<4x8x4xbf16>
    %9 = vector.shape_cast %8 : vector<4x8x4xbf16> to vector<32x4xbf16>
    %c0_11 = arith.constant 0 : index
    %c0_12 = arith.constant 0 : index
    %c0_13 = arith.constant 0 : index
    %c8 = arith.constant 8 : index
    %10 = vector.load %arg1[%c0_11, %c0_12, %c0_13, %c8] : memref<1x5x9x16xbf16, #tpu.memory_space<vmem>>, vector<1x4x8x4xbf16>
    %11 = vector.shape_cast %10 : vector<1x4x8x4xbf16> to vector<4x8x4xbf16>
    %12 = vector.shape_cast %11 : vector<4x8x4xbf16> to vector<32x4xbf16>
    %c0_14 = arith.constant 0 : index
    %c0_15 = arith.constant 0 : index
    %c0_16 = arith.constant 0 : index
    %c12 = arith.constant 12 : index
    %13 = vector.load %arg1[%c0_14, %c0_15, %c0_16, %c12] : memref<1x5x9x16xbf16, #tpu.memory_space<vmem>>, vector<1x4x8x4xbf16>
    %14 = vector.shape_cast %13 : vector<1x4x8x4xbf16> to vector<4x8x4xbf16>
    %15 = vector.shape_cast %14 : vector<4x8x4xbf16> to vector<32x4xbf16>
    %c0_17 = arith.constant 0 : index
    %c0_18 = arith.constant 0 : index
    %c1_19 = arith.constant 1 : index
    %c8_20 = arith.constant 8 : index
    %16 = vector.load %arg1[%c0_17, %c0_18, %c1_19, %c8_20] : memref<1x5x9x16xbf16, #tpu.memory_space<vmem>>, vector<1x4x8x4xbf16>
    %17 = vector.shape_cast %16 : vector<1x4x8x4xbf16> to vector<4x8x4xbf16>
    %18 = vector.shape_cast %17 : vector<4x8x4xbf16> to vector<32x4xbf16>
    %c0_21 = arith.constant 0 : index
    %c1_22 = arith.constant 1 : index
    %c0_23 = arith.constant 0 : index
    %c0_24 = arith.constant 0 : index
    %19 = vector.load %arg1[%c0_21, %c1_22, %c0_23, %c0_24] : memref<1x5x9x16xbf16, #tpu.memory_space<vmem>>, vector<1x4x8x4xbf16>
    %20 = vector.shape_cast %19 : vector<1x4x8x4xbf16> to vector<4x8x4xbf16>
    %21 = vector.shape_cast %20 : vector<4x8x4xbf16> to vector<32x4xbf16>
    %c0_25 = arith.constant 0 : index
    %c1_26 = arith.constant 1 : index
    %c0_27 = arith.constant 0 : index
    %c4_28 = arith.constant 4 : index
    %22 = vector.load %arg1[%c0_25, %c1_26, %c0_27, %c4_28] : memref<1x5x9x16xbf16, #tpu.memory_space<vmem>>, vector<1x4x8x4xbf16>
    %23 = vector.shape_cast %22 : vector<1x4x8x4xbf16> to vector<4x8x4xbf16>
    %24 = vector.shape_cast %23 : vector<4x8x4xbf16> to vector<32x4xbf16>
    %c0_29 = arith.constant 0 : index
    %c1_30 = arith.constant 1 : index
    %c1_31 = arith.constant 1 : index
    %c0_32 = arith.constant 0 : index
    %25 = vector.load %arg1[%c0_29, %c1_30, %c1_31, %c0_32] : memref<1x5x9x16xbf16, #tpu.memory_space<vmem>>, vector<1x4x8x4xbf16>
    %26 = vector.shape_cast %25 : vector<1x4x8x4xbf16> to vector<4x8x4xbf16>
    %27 = vector.shape_cast %26 : vector<4x8x4xbf16> to vector<32x4xbf16>
    %28 = tpu.concatenate %3, %6, %9, %12, %15, %18, %21, %24, %27 in 1 : vector<32x4xbf16>, vector<32x4xbf16>, vector<32x4xbf16>, vector<32x4xbf16>, vector<32x4xbf16>, vector<32x4xbf16>, vector<32x4xbf16>, vector<32x4xbf16>, vector<32x4xbf16> -> vector<32x36xbf16>
    %cst = arith.constant dense<0.000000e+00> : vector<32x2xf32>
    %29 = tpu.matmul %28, %0, %cst {dimension_numbers = #tpu.dot_dimension_numbers<[1], [0], [0], [1], [0, 0, 1, 1], [], []>} : vector<32x36xbf16>, vector<36x2xbf16>, vector<32x2xf32> -> vector<32x2xf32>
    %30 = vector.shape_cast %29 : vector<32x2xf32> to vector<4x8x2xf32>
    %c0_33 = arith.constant 0 : index
    %c0_34 = arith.constant 0 : index
    %c1_35 = arith.constant 1 : index
    %c4_36 = arith.constant 4 : index
    %31 = vector.load %arg1[%c0_33, %c0_34, %c1_35, %c4_36] : memref<1x5x9x16xbf16, #tpu.memory_space<vmem>>, vector<1x4x8x4xbf16>
    %32 = vector.shape_cast %31 : vector<1x4x8x4xbf16> to vector<4x8x4xbf16>
    %33 = vector.shape_cast %32 : vector<4x8x4xbf16> to vector<32x4xbf16>
    %c0_37 = arith.constant 0 : index
    %c0_38 = arith.constant 0 : index
    %c1_39 = arith.constant 1 : index
    %c12_40 = arith.constant 12 : index
    %34 = vector.load %arg1[%c0_37, %c0_38, %c1_39, %c12_40] : memref<1x5x9x16xbf16, #tpu.memory_space<vmem>>, vector<1x4x8x4xbf16>
    %35 = vector.shape_cast %34 : vector<1x4x8x4xbf16> to vector<4x8x4xbf16>
    %36 = vector.shape_cast %35 : vector<4x8x4xbf16> to vector<32x4xbf16>
    %c0_41 = arith.constant 0 : index
    %c1_42 = arith.constant 1 : index
    %c1_43 = arith.constant 1 : index
    %c4_44 = arith.constant 4 : index
    %37 = vector.load %arg1[%c0_41, %c1_42, %c1_43, %c4_44] : memref<1x5x9x16xbf16, #tpu.memory_space<vmem>>, vector<1x4x8x4xbf16>
    %38 = vector.shape_cast %37 : vector<1x4x8x4xbf16> to vector<4x8x4xbf16>
    %39 = vector.shape_cast %38 : vector<4x8x4xbf16> to vector<32x4xbf16>
    %40 = tpu.concatenate %6, %9, %33, %15, %18, %36, %24, %27, %39 in 1 : vector<32x4xbf16>, vector<32x4xbf16>, vector<32x4xbf16>, vector<32x4xbf16>, vector<32x4xbf16>, vector<32x4xbf16>, vector<32x4xbf16>, vector<32x4xbf16>, vector<32x4xbf16> -> vector<32x36xbf16>
    %cst_45 = arith.constant dense<0.000000e+00> : vector<32x2xf32>
    %41 = tpu.matmul %40, %0, %cst_45 {dimension_numbers = #tpu.dot_dimension_numbers<[1], [0], [0], [1], [0, 0, 1, 1], [], []>} : vector<32x36xbf16>, vector<36x2xbf16>, vector<32x2xf32> -> vector<32x2xf32>
    %42 = vector.shape_cast %41 : vector<32x2xf32> to vector<4x8x2xf32>
    %c0_46 = arith.constant 0 : index
    %c1_47 = arith.constant 1 : index
    %c0_48 = arith.constant 0 : index
    %c8_49 = arith.constant 8 : index
    %43 = vector.load %arg1[%c0_46, %c1_47, %c0_48, %c8_49] : memref<1x5x9x16xbf16, #tpu.memory_space<vmem>>, vector<1x4x8x4xbf16>
    %44 = vector.shape_cast %43 : vector<1x4x8x4xbf16> to vector<4x8x4xbf16>
    %45 = vector.shape_cast %44 : vector<4x8x4xbf16> to vector<32x4xbf16>
    %c0_50 = arith.constant 0 : index
    %c1_51 = arith.constant 1 : index
    %c0_52 = arith.constant 0 : index
    %c12_53 = arith.constant 12 : index
    %46 = vector.load %arg1[%c0_50, %c1_51, %c0_52, %c12_53] : memref<1x5x9x16xbf16, #tpu.memory_space<vmem>>, vector<1x4x8x4xbf16>
    %47 = vector.shape_cast %46 : vector<1x4x8x4xbf16> to vector<4x8x4xbf16>
    %48 = vector.shape_cast %47 : vector<4x8x4xbf16> to vector<32x4xbf16>
    %c0_54 = arith.constant 0 : index
    %c1_55 = arith.constant 1 : index
    %c1_56 = arith.constant 1 : index
    %c8_57 = arith.constant 8 : index
    %49 = vector.load %arg1[%c0_54, %c1_55, %c1_56, %c8_57] : memref<1x5x9x16xbf16, #tpu.memory_space<vmem>>, vector<1x4x8x4xbf16>
    %50 = vector.shape_cast %49 : vector<1x4x8x4xbf16> to vector<4x8x4xbf16>
    %51 = vector.shape_cast %50 : vector<4x8x4xbf16> to vector<32x4xbf16>
    %52 = tpu.concatenate %12, %15, %18, %21, %24, %27, %45, %48, %51 in 1 : vector<32x4xbf16>, vector<32x4xbf16>, vector<32x4xbf16>, vector<32x4xbf16>, vector<32x4xbf16>, vector<32x4xbf16>, vector<32x4xbf16>, vector<32x4xbf16>, vector<32x4xbf16> -> vector<32x36xbf16>
    %cst_58 = arith.constant dense<0.000000e+00> : vector<32x2xf32>
    %53 = tpu.matmul %52, %0, %cst_58 {dimension_numbers = #tpu.dot_dimension_numbers<[1], [0], [0], [1], [0, 0, 1, 1], [], []>} : vector<32x36xbf16>, vector<36x2xbf16>, vector<32x2xf32> -> vector<32x2xf32>
    %54 = vector.shape_cast %53 : vector<32x2xf32> to vector<4x8x2xf32>
    %c0_59 = arith.constant 0 : index
    %c1_60 = arith.constant 1 : index
    %c1_61 = arith.constant 1 : index
    %c12_62 = arith.constant 12 : index
    %55 = vector.load %arg1[%c0_59, %c1_60, %c1_61, %c12_62] : memref<1x5x9x16xbf16, #tpu.memory_space<vmem>>, vector<1x4x8x4xbf16>
    %56 = vector.shape_cast %55 : vector<1x4x8x4xbf16> to vector<4x8x4xbf16>
    %57 = vector.shape_cast %56 : vector<4x8x4xbf16> to vector<32x4xbf16>
    %58 = tpu.concatenate %15, %18, %36, %24, %27, %39, %48, %51, %57 in 1 : vector<32x4xbf16>, vector<32x4xbf16>, vector<32x4xbf16>, vector<32x4xbf16>, vector<32x4xbf16>, vector<32x4xbf16>, vector<32x4xbf16>, vector<32x4xbf16>, vector<32x4xbf16> -> vector<32x36xbf16>
    %cst_63 = arith.constant dense<0.000000e+00> : vector<32x2xf32>
    %59 = tpu.matmul %58, %0, %cst_63 {dimension_numbers = #tpu.dot_dimension_numbers<[1], [0], [0], [1], [0, 0, 1, 1], [], []>} : vector<32x36xbf16>, vector<36x2xbf16>, vector<32x2xf32> -> vector<32x2xf32>
    %60 = vector.shape_cast %59 : vector<32x2xf32> to vector<4x8x2xf32>
    %61 = tpu.concatenate %30, %42, %54, %60 in 2 : vector<4x8x2xf32>, vector<4x8x2xf32>, vector<4x8x2xf32>, vector<4x8x2xf32> -> vector<4x8x8xf32>
    %c0_64 = arith.constant 0 : index
    %c0_65 = arith.constant 0 : index
    %c0_66 = arith.constant 0 : index
    %c0_67 = arith.constant 0 : index
    %62 = vector.load %arg3[%c0_64, %c0_65, %c0_66, %c0_67] : memref<1x4x8x8xf32, #tpu.memory_space<vmem>>, vector<1x4x8x8xf32>
    %63 = vector.shape_cast %62 : vector<1x4x8x8xf32> to vector<4x8x8xf32>
    %64 = vector.shape_cast %61 : vector<4x8x8xf32> to vector<1x4x8x8xf32>
    tpu.vector_store %arg3[%c0_64, %c0_65, %c0_66, %c0_67], %64 {strides = array<i32>} : memref<1x4x8x8xf32, #tpu.memory_space<vmem>>, vector<1x4x8x8xf32>,
    return
  }
  func.func @transform_0(%arg0: i32) -> (i32, i32, i32, i32) {
    %c0_i32 = arith.constant 0 : i32
    %c0_i32_0 = arith.constant 0 : i32
    %c0_i32_1 = arith.constant 0 : i32
    %c0_i32_2 = arith.constant 0 : i32
    return %arg0, %c0_i32, %c0_i32_0, %c0_i32_1 : i32, i32, i32, i32
  }
  func.func @transform_1(%arg0: i32) -> (i32, i32) {
    %c0_i32 = arith.constant 0 : i32
    %c0_i32_0 = arith.constant 0 : i32
    %c0_i32_1 = arith.constant 0 : i32
    return %c0_i32, %c0_i32_0 : i32, i32
  }
  func.func @transform_2(%arg0: i32) -> (i32, i32, i32, i32) {
    %c0_i32 = arith.constant 0 : i32
    %c0_i32_0 = arith.constant 0 : i32
    %c0_i32_1 = arith.constant 0 : i32
    %c0_i32_2 = arith.constant 0 : i32
    return %arg0, %c0_i32, %c0_i32_0, %c0_i32_1 : i32, i32, i32, i32
  }
}

</mosaic_0001>

<llo_original>
// kernel: downsample_forward.1
$region0: #{downsample_forward.1}
  #allocation0 [shape = 'u32[]', space=smem, size = 0x4, offset = 0x4, fixed_abs, tag = 'smem constant byte address 0x4 - core index']
  #allocation1 [shape = 'u32[72,128]{1,0:T(1,128)}', space=vmem, size = 0x9000, scoped, tag = 'internal scratch']
  %s0 = inlined_call_operand.vmem [shape: bf16[4,5,9,16], index: 0, kind: input, shape index: {}]
  %s1 = inlined_call_operand.vmem [shape: bf16[36,2], index: 1, kind: input, shape index: {}]
  %s2 = inlined_call_operand.vmem [shape: f32[4,4,8,8], index: 2, kind: output, shape index: {}]
  %s3 = sld [smem:[#allocation0]]
  $region41: #{downsample_forward.1} parent=0
    _
  %s5 = ssub.s32 1, %s3
  %s6 = scalar_select 0, %s5, %s3
  loop: start=0, step=1, limit=6
  $region2: #{downsample_forward.1} parent=0 // loop_pre_header
    _
  $region3: #{downsample_forward.1} parent=0 // loop_header
    %s8 = sphi 0, %s12
    %p9 = scmp.ge.s32.totalorder %s8, 6
    %s18 = sphi 0, %s20
    %s21 = sphi 0, %s18
    %s22 = sphi 0, %s21
    %s38 = sphi 0, %s22
    %s42 = sphi 0, %s42
    %s44 = sphi 0, %s42
    %s45 = sphi 0, %s44
    %s59 = sphi 0, %s45
    %s65 = sphi 0, %s67
    %s68 = sphi 0, %s65
    %s69 = sphi 0, %s68
    %s85 = sphi 0, %s69
  $region4: #{downsample_forward.1} parent=0 // loop_header_branch
    %11 = sbr.rel (%p9) target = $region8
  $region5: #{downsample_forward.1} parent=0 // loop_body
    %s13 = ssub.s32 %s8, 1
    %s14 = ssub.s32 %s8, 2
    %s15 = sadd.s32 %s8, 1
    %s16 = ssub.s32 %s8, %s15
    %p17 = scmp.eq.s32.totalorder %s16, 0
    %s19 = sadd.s32 %s18, 1
    %s20 = scalar_select %p17, %s18, %s19
    %p23 = pneg %p17
    %p24 = scmp.eq.s32.totalorder %s8, 3
    %p25 = por %p23, %p24
    %p26 = scmp.ne.s32.totalorder %s18, %s21
    %p27 = scmp.eq.s32.totalorder %s8, 0
    %p28 = por %p26, %p27
    %p29 = scmp.ne.s32.totalorder %s18, %s21
    %p30 = scmp.eq.s32.totalorder %s13, 3
    %p31 = por %p29, %p30
    %p32 = scmp.ne.s32.totalorder %s21, %s22
    %p33 = scmp.eq.s32.totalorder %s13, 0
    %p34 = por %p32, %p33
    %p35 = scmp.ne.s32.totalorder %s21, %s22
    %p36 = scmp.eq.s32.totalorder %s14, 3
    %p37 = por %p35, %p36
    %p39 = scmp.ne.s32.totalorder %s22, %s38
    %p40 = scmp.eq.s32.totalorder %s14, 0
    %p41 = por %p39, %p40
    %s43 = sadd.s32 %s42, 1
    %p46 = scmp.eq.s32.totalorder %s8, 3
    %p47 = scmp.ne.s32.totalorder %s42, %s44
    %p48 = scmp.eq.s32.totalorder %s8, 0
    %p49 = por %p47, %p48
    %p50 = scmp.ne.s32.totalorder %s42, %s44
    %p51 = scmp.eq.s32.totalorder %s13, 3
    %p52 = por %p50, %p51
    %p53 = scmp.ne.s32.totalorder %s44, %s45
    %p54 = scmp.eq.s32.totalorder %s13, 0
    %p55 = por %p53, %p54
    %p56 = scmp.ne.s32.totalorder %s44, %s45
    %p57 = scmp.eq.s32.totalorder %s14, 3
    %p58 = por %p56, %p57
    %p60 = scmp.ne.s32.totalorder %s45, %s59
    %p61 = scmp.eq.s32.totalorder %s14, 0
    %p62 = por %p60, %p61
    %s63 = ssub.s32 %s8, %s15
    %p64 = scmp.eq.s32.totalorder %s63, 0
    %s66 = sadd.s32 %s65, 1
    %s67 = scalar_select %p64, %s65, %s66
    %p70 = pneg %p64
    %p71 = scmp.eq.s32.totalorder %s8, 3
    %p72 = por %p70, %p71
    %p73 = scmp.ne.s32.totalorder %s65, %s68
    %p74 = scmp.eq.s32.totalorder %s8, 0
    %p75 = por %p73, %p74
    %p76 = scmp.ne.s32.totalorder %s65, %s68
    %p77 = scmp.eq.s32.totalorder %s13, 3
    %p78 = por %p76, %p77
    %p79 = scmp.ne.s32.totalorder %s68, %s69
    %p80 = scmp.eq.s32.totalorder %s13, 0
    %p81 = por %p79, %p80
    %p82 = scmp.ne.s32.totalorder %s68, %s69
    %p83 = scmp.eq.s32.totalorder %s14, 3
    %p84 = por %p82, %p83
    %p86 = scmp.ne.s32.totalorder %s69, %s85
    %p87 = scmp.eq.s32.totalorder %s14, 0
    %p88 = por %p86, %p87
    %p89 = scmp.le.s32.totalorder 1, %s8
    %p90 = scmp.lt.s32.totalorder %s8, 5
    %p91 = pnand %p89, %p90
    %p92 = pneg %p91
    // Predicated region
    $region9: #{downsample_forward.1} parent=5 // pred_check
      _
    $region10: #{downsample_forward.1} parent=5 // pred_check_branch
      %94 = sbr.rel (%p91) target = $region12
    $region11: #{downsample_forward.1} parent=5 // pred_region
      %s95 = ssub.s32 %s8, 1
      // Predicated region
      $region13: #{downsample_forward.1} parent=11 // pred_check
        %p96 = pneg %p55
      $region14: #{downsample_forward.1} parent=11 // pred_check_branch
        %98 = sbr.rel (%p96) target = $region16
      $region15: #{downsample_forward.1} parent=11 // pred_region
        _
      $region16: #{downsample_forward.1} parent=11 // pred_fallthru
        _
    $region12: #{downsample_forward.1} parent=5 // pred_fallthru
      _
    %p99 = scmp.lt.s32.totalorder %s8, 4
    // Predicated region
    $region17: #{downsample_forward.1} parent=5 // pred_check
      %p100 = pneg %p99
    $region18: #{downsample_forward.1} parent=5 // pred_check_branch
      %102 = sbr.rel (%p100) target = $region20
    $region19: #{downsample_forward.1} parent=5 // pred_region
      // Predicated region
      $region21: #{downsample_forward.1} parent=19 // pred_check
        %p103 = pneg %p28
      $region22: #{downsample_forward.1} parent=19 // pred_check_branch
        %105 = sbr.rel (%p103) target = $region24
      $region23: #{downsample_forward.1} parent=19 // pred_region
        %p106 = scmp.lt.s32.totalorder %s8, 3
        %s107 = scalar_select %p106, %s8, 3
        %s108 = smul.addr %s107, 10
        %s109 = smul.addr %s108, 4
        %s110 = scalar_lea.vmem %s0, %s109
      $region24: #{downsample_forward.1} parent=19 // pred_fallthru
        _
    $region20: #{downsample_forward.1} parent=5 // pred_fallthru
      _
    %p111 = scmp.le.s32.totalorder 1, %s8
    %p112 = scmp.lt.s32.totalorder %s8, 5
    %p113 = pnand %p111, %p112
    %p114 = pneg %p113
    // Predicated region
    $region25: #{downsample_forward.1} parent=5 // pred_check
      _
    $region26: #{downsample_forward.1} parent=5 // pred_check_branch
      %116 = sbr.rel (%p113) target = $region28
    $region27: #{downsample_forward.1} parent=5 // pred_region
      %s117 = ssub.s32 %s8, 1
      %p118 = scmp.lt.s32.totalorder %s13, 3
      %s119 = scalar_select %p118, %s13, 3
      %s120 = smul.addr %s119, 10
      %s121 = smul.addr %s120, 4
      %s122 = scalar_lea.vmem %s0, %s121
      %p123 = pneg %p34
      %p124 = pneg %p31
      %p125 = pneg %p55
      %p126 = pneg %p52
      %p127 = pneg %p81
      %p128 = pneg %p78
      %p129 = scmp.lt.s32.totalorder %s13, 3
      %s130 = scalar_select %p129, %s13, 3
      %s131 = smul.addr %s130, 4
      %s132 = smul.addr %s131, 8
      %s133 = scalar_lea.vmem %s2, %s132
      %p134 = scmp.lt.s32.totalorder %s13, 3
      %s135 = scalar_select %p134, %s13, 3
      %s136 = smul.addr %s135, 10
      %s137 = smul.addr %s136, 4
      %s138 = scalar_lea.vmem %s0, %s137
      %p139 = scmp.lt.s32.totalorder %s13, 3
      %s140 = scalar_select %p139, %s13, 3
      %s141 = smul.addr %s140, 4
      %s142 = smul.addr %s141, 8
      %s143 = scalar_lea.vmem %s2, %s142
      %v145 = vld [vmem:[%s1] sm:$0xf]
      %v146 = vld [vmem:[%s1 + $0x4] sm:$0xf]
      %v147 = vld [vmem:[%s1 + $0x8] sm:$0xf]
      %v148 = vld [vmem:[%s1 + $0xc] sm:$0xf]
      %v149 = vld [vmem:[%s1 + $0x10] sm:$0x3]
      %v150 = vld [vmem:[%s138] sm:$0xf]
      %v151 = vld [vmem:[%s138 + $0x8] sm:$0xf]
      %v152 = vld [vmem:[%s138 + $0x10] sm:$0xf]
      %v153 = vld [vmem:[%s138 + $0x18] sm:$0xf]
      %v154 = vld [vmem:[%s138 + $0x4] sm:$0x1]
      %v155 = vld [vmem:[%s138 + $0xc] sm:$0x1]
      %v156 = vld [vmem:[%s138 + $0x14] sm:$0x1]
      %v157 = vld [vmem:[%s138 + $0x1c] sm:$0x1]
      %vm158 = vsmask.f32 3328
      %vm159 = vsmask.f32 7440
      %vm160 = vmor %vm158, %vm159
      %v162 = vshrl.u32 %v150, 16
      %v164 = vrot.slane %v162, 4
      %v165 = vshll.u32 %v150, 16
      %v167 = vrot.slane %v165, 5
      %v168 = vor.u32 %v164, %v167
      %v169 = vrot.slane %v168, 4
      %v171 = vshll.u32 %v154, 16
      %v173 = vrot.slane %v171, 5
      %v174 = vsel %vm160, %v169, %v173
      %v176 = vshrl.u32 %v151, 16
      %v178 = vrot.slane %v176, 4
      %v179 = vshll.u32 %v151, 16
      %v181 = vrot.slane %v179, 5
      %v182 = vor.u32 %v178, %v181
      %v183 = vrot.slane %v182, 4
      %v185 = vshll.u32 %v155, 16
      %v187 = vrot.slane %v185, 5
      %v188 = vsel %vm160, %v183, %v187
      %v190 = vshrl.u32 %v152, 16
      %v192 = vrot.slane %v190, 4
      %v193 = vshll.u32 %v152, 16
      %v195 = vrot.slane %v193, 5
      %v196 = vor.u32 %v192, %v195
      %v197 = vrot.slane %v196, 4
      %v199 = vshll.u32 %v156, 16
      %v201 = vrot.slane %v199, 5
      %v202 = vsel %vm160, %v197, %v201
      %v204 = vshrl.u32 %v153, 16
      %v206 = vrot.slane %v204, 4
      %v207 = vshll.u32 %v153, 16
      %v209 = vrot.slane %v207, 5
      %v210 = vor.u32 %v206, %v209
      %v211 = vrot.slane %v210, 4
      %v213 = vshll.u32 %v157, 16
      %v215 = vrot.slane %v213, 5
      %v216 = vsel %vm160, %v211, %v215
      %s217 = scalar_lea.vmem %s138, 8
      %v218 = vld [vmem:[%s217] sm:$0xf]
      %v219 = vld [vmem:[%s217 + $0x8] sm:$0xf]
      %v220 = vld [vmem:[%s217 + $0x10] sm:$0xf]
      %v221 = vld [vmem:[%s217 + $0x18] sm:$0xf]
      %v222 = vld [vmem:[%s217 + $0x4] sm:$0x1]
      %v223 = vld [vmem:[%s217 + $0xc] sm:$0x1]
      %v224 = vld [vmem:[%s217 + $0x14] sm:$0x1]
      %v225 = vld [vmem:[%s217 + $0x1c] sm:$0x1]
      %v227 = vshrl.u32 %v218, 16
      %v229 = vrot.slane %v227, 4
      %v230 = vshll.u32 %v218, 16
      %v232 = vrot.slane %v230, 5
      %v233 = vor.u32 %v229, %v232
      %v234 = vrot.slane %v233, 4
      %v236 = vshll.u32 %v222, 16
      %v238 = vrot.slane %v236, 5
      %v239 = vsel %vm160, %v234, %v238
      %v241 = vshrl.u32 %v219, 16
      %v243 = vrot.slane %v241, 4
      %v244 = vshll.u32 %v219, 16
      %v246 = vrot.slane %v244, 5
      %v247 = vor.u32 %v243, %v246
      %v248 = vrot.slane %v247, 4
      %v250 = vshll.u32 %v223, 16
      %v252 = vrot.slane %v250, 5
      %v253 = vsel %vm160, %v248, %v252
      %v255 = vshrl.u32 %v220, 16
      %v257 = vrot.slane %v255, 4
      %v258 = vshll.u32 %v220, 16
      %v260 = vrot.slane %v258, 5
      %v261 = vor.u32 %v257, %v260
      %v262 = vrot.slane %v261, 4
      %v264 = vshll.u32 %v224, 16
      %v266 = vrot.slane %v264, 5
      %v267 = vsel %vm160, %v262, %v266
      %v269 = vshrl.u32 %v221, 16
      %v271 = vrot.slane %v269, 4
      %v272 = vshll.u32 %v221, 16
      %v274 = vrot.slane %v272, 5
      %v275 = vor.u32 %v271, %v274
      %v276 = vrot.slane %v275, 4
      %v278 = vshll.u32 %v225, 16
      %v280 = vrot.slane %v278, 5
      %v281 = vsel %vm160, %v276, %v280
      %v286 = vunpack.c.l.b16 %v150
      %v287 = vunpack.c.l.b16 %v151
      %v288 = vunpack.c.l.b16 %v152
      %v289 = vunpack.c.l.b16 %v153
      %v290 = vpack.c.b16 %v287, %v286
      %v291 = vpack.c.b16 %v289, %v288
      %v292 = vunpack.c.l.b16 %v174
      %v293 = vunpack.c.l.b16 %v188
      %v294 = vunpack.c.l.b16 %v202
      %v295 = vunpack.c.l.b16 %v216
      %v296 = vpack.c.b16 %v293, %v292
      %v297 = vpack.c.b16 %v295, %v294
      %298 = vrot.lane.b32.xlu0 %v296, 8
      %v299 = vpop.permute.xlu0 %298
      %300 = vrot.lane.b32.xlu0 %v297, 8
      %v301 = vpop.permute.xlu0 %300
      %302 = vrot.lane.b32.xlu0 %v290, 4
      %v303 = vpop.permute.xlu0 %302
      %304 = vrot.lane.b32.xlu0 %v291, 4
      %v305 = vpop.permute.xlu0 %304
      %306 = vrot.lane.b32.xlu0 %v296, 12
      %v307 = vpop.permute.xlu0 %306
      %308 = vrot.lane.b32.xlu0 %v297, 12
      %v309 = vpop.permute.xlu0 %308
      %v314 = vunpack.c.l.b16 %v218
      %v315 = vunpack.c.l.b16 %v219
      %v316 = vunpack.c.l.b16 %v220
      %v317 = vunpack.c.l.b16 %v221
      %v318 = vpack.c.b16 %v315, %v314
      %v319 = vpack.c.b16 %v317, %v316
      %320 = vrot.lane.b32.xlu0 %v318, 24
      %v321 = vpop.permute.xlu0 %320
      %322 = vrot.lane.b32.xlu0 %v319, 24
      %v323 = vpop.permute.xlu0 %322
      %v324 = vunpack.c.l.b16 %v239
      %v325 = vunpack.c.l.b16 %v253
      %v326 = vunpack.c.l.b16 %v267
      %v327 = vunpack.c.l.b16 %v281
      %v328 = vpack.c.b16 %v325, %v324
      %v329 = vpack.c.b16 %v327, %v326
      %330 = vrot.lane.b32.xlu0 %v328, 32
      %v331 = vpop.permute.xlu0 %330
      %332 = vrot.lane.b32.xlu0 %v329, 32
      %v333 = vpop.permute.xlu0 %332
      %vm334 = vcmask 31744
      %vm337 = vcmask 64512
      %v339 = vsel %vm337, %v290, %v299
      %v341 = vsel %vm337, %v291, %v301
      %vm342 = vcmask 97280
      %v344 = vsel %vm342, %v339, %v303
      %v346 = vsel %vm342, %v341, %v305
      %vm347 = vcmask 130048
      %v348 = vsel %vm347, %v344, %v303
      %v349 = vsel %vm347, %v346, %v305
      %vm350 = vcmask 162816
      %v352 = vsel %vm350, %v348, %v307
      %v354 = vsel %vm350, %v349, %v309
      %vm355 = vcmask 195584
      %v357 = vsel %vm355, %v352, %v321
      %v359 = vsel %vm355, %v354, %v323
      %vm360 = vcmask 228352
      %v361 = vsel %vm360, %v357, %v321
      %v362 = vsel %vm360, %v359, %v323
      %vm363 = vcmask 261120
      %v365 = vsel %vm363, %v361, %v331
      %v367 = vsel %vm363, %v362, %v333
      %v373 = vunpack.c.l.b16 %v145
      %v374 = vunpack.c.l.b16 %v146
      %v375 = vunpack.c.l.b16 %v147
      %v376 = vunpack.c.l.b16 %v148
      %v377 = vunpack.c.l.b16 %v149
      %v378 = vpack.c.b16 %v374, %v373
      %v379 = vpack.c.b16 %v376, %v375
      %v380 = vpack.c.b16 %v377, %v377
      %vm383 = vcmask 293888
      %v384 = vsel %vm383, %v365, 0
      %v386 = vsel %vm383, %v367, 0
      %vm388 = vcmask 1041408
      %v390 = vsel %vm388, %v380, 0
      %392 = vmatpush.bf16.msra.mxu0 0
      %393 = vmatpush.bf16.msra.mxu0 0
      %394 = vmatpush.bf16.msra.mxu0 0
      %395 = vmatpush.bf16.msra.mxu0 0
      %396 = vmatpush.bf16.msra.mxu0 0
      %397 = vmatpush.bf16.msra.mxu0 %v390
      %398 = vmatpush.bf16.msra.mxu0 %v379
      %399 = vmatpush.bf16.msra.mxu0 %v378
      %400 = vmatmul.bf16.gmra.mxu0 %v384
      %v401 = vpop.f32.mrf.mxu0
      %v402 = vadd.f32 0.0, %v401
      %v403 = vpop.f32.mrf.mxu0
      %v404 = vadd.f32 0.0, %v403
      %405 = vmatmul.bf16.gmra.mxu0 %v386
      %v406 = vpop.f32.mrf.mxu0
      %v407 = vadd.f32 0.0, %v406
      %v408 = vpop.f32.mrf.mxu0
      %v409 = vadd.f32 0.0, %v408
      %410 = vdwg.mxu0
      %411 = vrot.lane.b32.xlu0 %v290, 124
      %v412 = vpop.permute.xlu0 %411
      %413 = vrot.lane.b32.xlu0 %v291, 124
      %v414 = vpop.permute.xlu0 %413
      %415 = vrot.lane.b32.xlu0 %v296, 4
      %v416 = vpop.permute.xlu0 %415
      %417 = vrot.lane.b32.xlu0 %v297, 4
      %v418 = vpop.permute.xlu0 %417
      %419 = vrot.lane.b32.xlu0 %v318, 20
      %v420 = vpop.permute.xlu0 %419
      %421 = vrot.lane.b32.xlu0 %v319, 20
      %v422 = vpop.permute.xlu0 %421
      %423 = vrot.lane.b32.xlu0 %v328, 28
      %v424 = vpop.permute.xlu0 %423
      %425 = vrot.lane.b32.xlu0 %v329, 28
      %v426 = vpop.permute.xlu0 %425
      %v429 = vsel %vm334, %v412, %v416
      %v432 = vsel %vm334, %v414, %v418
      %v433 = vsel %vm337, %v429, %v416
      %v434 = vsel %vm337, %v432, %v418
      %v435 = vsel %vm342, %v433, %v290
      %v436 = vsel %vm342, %v434, %v291
      %v437 = vsel %vm347, %v435, %v299
      %v438 = vsel %vm347, %v436, %v301
      %v439 = vsel %vm350, %v437, %v299
      %v440 = vsel %vm350, %v438, %v301
      %v442 = vsel %vm355, %v439, %v420
      %v444 = vsel %vm355, %v440, %v422
      %v446 = vsel %vm360, %v442, %v424
      %v448 = vsel %vm360, %v444, %v426
      %v449 = vsel %vm363, %v446, %v424
      %v450 = vsel %vm363, %v448, %v426
      %v451 = vsel %vm383, %v449, 0
      %v453 = vsel %vm383, %v450, 0
      %455 = vmatpush.bf16.msra.mxu0 0
      %456 = vmatpush.bf16.msra.mxu0 0
      %457 = vmatpush.bf16.msra.mxu0 0
      %458 = vmatpush.bf16.msra.mxu0 0
      %459 = vmatpush.bf16.msra.mxu0 0
      %460 = vmatpush.bf16.msra.mxu0 %v390
      %461 = vmatpush.bf16.msra.mxu0 %v379
      %462 = vmatpush.bf16.msra.mxu0 %v378
      %463 = vmatmul.bf16.gmra.mxu0 %v451
      %v464 = vpop.f32.mrf.mxu0
      %v465 = vadd.f32 0.0, %v464
      %v466 = vpop.f32.mrf.mxu0
      %v467 = vadd.f32 0.0, %v466
      %468 = vmatmul.bf16.gmra.mxu0 %v453
      %v469 = vpop.f32.mrf.mxu0
      %v470 = vadd.f32 0.0, %v469
      %v471 = vpop.f32.mrf.mxu0
      %v472 = vadd.f32 0.0, %v471
      %473 = vdwg.mxu0
      %474 = vrot.lane.b32.xlu0 %v290, 120
      %v475 = vpop.permute.xlu0 %474
      %476 = vrot.lane.b32.xlu0 %v291, 120
      %v477 = vpop.permute.xlu0 %476
      %478 = vrot.lane.b32.xlu0 %v318, 12
      %v479 = vpop.permute.xlu0 %478
      %480 = vrot.lane.b32.xlu0 %v319, 12
      %v481 = vpop.permute.xlu0 %480
      %482 = vrot.lane.b32.xlu0 %v328, 20
      %v483 = vpop.permute.xlu0 %482
      %484 = vrot.lane.b32.xlu0 %v329, 20
      %v485 = vpop.permute.xlu0 %484
      %486 = vrot.lane.b32.xlu0 %v318, 16
      %v487 = vpop.permute.xlu0 %486
      %488 = vrot.lane.b32.xlu0 %v319, 16
      %v489 = vpop.permute.xlu0 %488
      %490 = vrot.lane.b32.xlu0 %v328, 24
      %v491 = vpop.permute.xlu0 %490
      %492 = vrot.lane.b32.xlu0 %v329, 24
      %v493 = vpop.permute.xlu0 %492
      %v497 = vsel %vm337, %v475, %v296
      %v499 = vsel %vm337, %v477, %v297
      %v501 = vsel %vm342, %v497, %v479
      %v503 = vsel %vm342, %v499, %v481
      %v504 = vsel %vm347, %v501, %v479
      %v505 = vsel %vm347, %v503, %v481
      %v507 = vsel %vm350, %v504, %v483
      %v509 = vsel %vm350, %v505, %v485
      %v511 = vsel %vm355, %v507, %v487
      %v513 = vsel %vm355, %v509, %v489
      %v514 = vsel %vm360, %v511, %v487
      %v515 = vsel %vm360, %v513, %v489
      %v517 = vsel %vm363, %v514, %v491
      %v519 = vsel %vm363, %v515, %v493
      %v520 = vsel %vm383, %v517, 0
      %v522 = vsel %vm383, %v519, 0
      %524 = vmatpush.bf16.msra.mxu0 0
      %525 = vmatpush.bf16.msra.mxu0 0
      %526 = vmatpush.bf16.msra.mxu0 0
      %527 = vmatpush.bf16.msra.mxu0 0
      %528 = vmatpush.bf16.msra.mxu0 0
      %529 = vmatpush.bf16.msra.mxu0 %v390
      %530 = vmatpush.bf16.msra.mxu0 %v379
      %531 = vmatpush.bf16.msra.mxu0 %v378
      %532 = vmatmul.bf16.gmra.mxu0 %v520
      %v533 = vpop.f32.mrf.mxu0
      %v534 = vadd.f32 0.0, %v533
      %v535 = vpop.f32.mrf.mxu0
      %v536 = vadd.f32 0.0, %v535
      %537 = vmatmul.bf16.gmra.mxu0 %v522
      %v538 = vpop.f32.mrf.mxu0
      %v539 = vadd.f32 0.0, %v538
      %v540 = vpop.f32.mrf.mxu0
      %v541 = vadd.f32 0.0, %v540
      %542 = vdwg.mxu0
      %543 = vrot.lane.b32.xlu0 %v290, 116
      %v544 = vpop.permute.xlu0 %543
      %545 = vrot.lane.b32.xlu0 %v291, 116
      %v546 = vpop.permute.xlu0 %545
      %547 = vrot.lane.b32.xlu0 %v296, 124
      %v548 = vpop.permute.xlu0 %547
      %549 = vrot.lane.b32.xlu0 %v297, 124
      %v550 = vpop.permute.xlu0 %549
      %551 = vrot.lane.b32.xlu0 %v318, 8
      %v552 = vpop.permute.xlu0 %551
      %553 = vrot.lane.b32.xlu0 %v319, 8
      %v554 = vpop.permute.xlu0 %553
      %555 = vrot.lane.b32.xlu0 %v328, 16
      %v556 = vpop.permute.xlu0 %555
      %557 = vrot.lane.b32.xlu0 %v329, 16
      %v558 = vpop.permute.xlu0 %557
      %v561 = vsel %vm334, %v544, %v548
      %v564 = vsel %vm334, %v546, %v550
      %v565 = vsel %vm337, %v561, %v548
      %v566 = vsel %vm337, %v564, %v550
      %v568 = vsel %vm342, %v565, %v552
      %v570 = vsel %vm342, %v566, %v554
      %v572 = vsel %vm347, %v568, %v556
      %v574 = vsel %vm347, %v570, %v558
      %v575 = vsel %vm350, %v572, %v556
      %v576 = vsel %vm350, %v574, %v558
      %v577 = vsel %vm355, %v575, %v479
      %v578 = vsel %vm355, %v576, %v481
      %v579 = vsel %vm360, %v577, %v483
      %v580 = vsel %vm360, %v578, %v485
      %v581 = vsel %vm363, %v579, %v483
      %v582 = vsel %vm363, %v580, %v485
      %v583 = vsel %vm383, %v581, 0
      %v585 = vsel %vm383, %v582, 0
      %587 = vmatpush.bf16.msra.mxu0 0
      %588 = vmatpush.bf16.msra.mxu0 0
      %589 = vmatpush.bf16.msra.mxu0 0
      %590 = vmatpush.bf16.msra.mxu0 0
      %591 = vmatpush.bf16.msra.mxu0 0
      %592 = vmatpush.bf16.msra.mxu0 %v390
      %593 = vmatpush.bf16.msra.mxu0 %v379
      %594 = vmatpush.bf16.msra.mxu0 %v378
      %595 = vmatmul.bf16.gmra.mxu0 %v583
      %v596 = vpop.f32.mrf.mxu0
      %v597 = vadd.f32 0.0, %v596
      %v598 = vpop.f32.mrf.mxu0
      %v599 = vadd.f32 0.0, %v598
      %600 = vmatmul.bf16.gmra.mxu0 %v585
      %v601 = vpop.f32.mrf.mxu0
      %v602 = vadd.f32 0.0, %v601
      %v603 = vpop.f32.mrf.mxu0
      %v604 = vadd.f32 0.0, %v603
      %605 = vdwg.mxu0
      %610 = vrot.lane.b32.xlu0 %v465, 2
      %v611 = vpop.permute.xlu0 %610
      %612 = vrot.lane.b32.xlu0 %v467, 2
      %v613 = vpop.permute.xlu0 %612
      %614 = vrot.lane.b32.xlu0 %v470, 2
      %v615 = vpop.permute.xlu0 %614
      %616 = vrot.lane.b32.xlu0 %v472, 2
      %v617 = vpop.permute.xlu0 %616
      %626 = vrot.lane.b32.xlu0 %v534, 4
      %v627 = vpop.permute.xlu0 %626
      %628 = vrot.lane.b32.xlu0 %v536, 4
      %v629 = vpop.permute.xlu0 %628
      %630 = vrot.lane.b32.xlu0 %v539, 4
      %v631 = vpop.permute.xlu0 %630
      %632 = vrot.lane.b32.xlu0 %v541, 4
      %v633 = vpop.permute.xlu0 %632
      %642 = vrot.lane.b32.xlu0 %v597, 6
      %v643 = vpop.permute.xlu0 %642
      %644 = vrot.lane.b32.xlu0 %v599, 6
      %v645 = vpop.permute.xlu0 %644
      %646 = vrot.lane.b32.xlu0 %v602, 6
      %v647 = vpop.permute.xlu0 %646
      %648 = vrot.lane.b32.xlu0 %v604, 6
      %v649 = vpop.permute.xlu0 %648
      %vm654 = vcmask 15360
      %v655 = vsel %vm654, %v402, %v611
      %v656 = vsel %vm654, %v404, %v613
      %v657 = vsel %vm654, %v407, %v615
      %v658 = vsel %vm654, %v409, %v617
      %v659 = vsel %vm334, %v655, %v627
      %v660 = vsel %vm334, %v656, %v629
      %v661 = vsel %vm334, %v657, %v631
      %v662 = vsel %vm334, %v658, %v633
      %vm663 = vcmask 48128
      %v664 = vsel %vm663, %v659, %v643
      %v665 = vsel %vm663, %v660, %v645
      %v666 = vsel %vm663, %v661, %v647
      %v667 = vsel %vm663, %v662, %v649
      %668 = vst.msk [vmem:[%s143] sm:$0xff] %vm337, %v664
      %669 = vst.msk [vmem:[%s143 + $0x8] sm:$0xff] %vm337, %v665
      %670 = vst.msk [vmem:[%s143 + $0x10] sm:$0xff] %vm337, %v666
      %671 = vst.msk [vmem:[%s143 + $0x18] sm:$0xff] %vm337, %v667
      %p672 = scmp.lt.s32.totalorder %s13, 3
      %s673 = scalar_select %p672, %s13, 3
      %s674 = smul.addr %s673, 4
      %s675 = smul.addr %s674, 8
      %s676 = scalar_lea.vmem %s2, %s675
      // Predicated region
      $region29: #{downsample_forward.1} parent=27 // pred_check
        %p677 = pneg %p78
      $region30: #{downsample_forward.1} parent=27 // pred_check_branch
        %679 = sbr.rel (%p677) target = $region32
      $region31: #{downsample_forward.1} parent=27 // pred_region
        _
      $region32: #{downsample_forward.1} parent=27 // pred_fallthru
        _
    $region28: #{downsample_forward.1} parent=5 // pred_fallthru
      _
    %p680 = scmp.le.s32.totalorder 2, %s8
    // Predicated region
    $region33: #{downsample_forward.1} parent=5 // pred_check
      %p681 = pneg %p680
    $region34: #{downsample_forward.1} parent=5 // pred_check_branch
      %683 = sbr.rel (%p681) target = $region36
    $region35: #{downsample_forward.1} parent=5 // pred_region
      %s684 = ssub.s32 %s8, 2
      // Predicated region
      $region37: #{downsample_forward.1} parent=35 // pred_check
        %p685 = pneg %p84
      $region38: #{downsample_forward.1} parent=35 // pred_check_branch
        %687 = sbr.rel (%p685) target = $region40
      $region39: #{downsample_forward.1} parent=35 // pred_region
        %p688 = scmp.lt.s32.totalorder %s14, 3
        %s689 = scalar_select %p688, %s14, 3
        %s690 = smul.addr %s689, 4
        %s691 = smul.addr %s690, 8
        %s692 = scalar_lea.vmem %s2, %s691
      $region40: #{downsample_forward.1} parent=35 // pred_fallthru
        _
    $region36: #{downsample_forward.1} parent=5 // pred_fallthru
      _
  $region6: #{downsample_forward.1} parent=0 // loop_footer
    %s12 = sadd.s32 1, %s8
  $region7: #{downsample_forward.1} parent=0 // loop_footer_branch
    %7 = sbr.rel target = $region3
  $region8: #{downsample_forward.1} parent=0 // loop_exit
    _

</llo_original>
